<compile_context>
chip_gen: v7x
topology: tpu7x:2x2x1
jax: 0.10.0
libtpu: 0.0.40
codegen_flags: <defaults>
</compile_context>

<pallas_src>
import jax
import jax.numpy as jnp
from jax.experimental import pallas as pl
from jax.experimental.pallas import tpu as pltpu


def _pick_batch_pack(N, C):
    """Images packed per grid step: fill the 8 f32 sublanes (Nb*C <= 8) but
    keep >= 2 grid steps when N >= 2 so megacore can split the grid."""
    max_pack = max(1, 8 // C)
    cap = max(1, N // 2) if N >= 2 else 1
    nb = 1
    for cand in range(1, min(max_pack, cap, N) + 1):
        if N % cand == 0:
            nb = cand
    return nb


def _make_residual_block_kernel(NbC, HW, shifts):
    n_taps = len(shifts)  # 9

    def kernel(x_ref, m_ref, w1_ref, b1_ref, w2_ref, b2_ref, o_ref, taps_ref):
        # x_ref : (1, NbC, HW)   Nb images stacked on sublanes, h*W+w on lanes
        # m_ref : (9*NbC, HW)    precomputed border masks (hoisted out)
        # w*_ref: (NbC, 9*NbC)   block-diagonal packed conv weights
        # b*_ref: (NbC, 1)
        # o_ref : (1, NbC, HW)
        # taps_ref: VMEM scratch (9*NbC, HW) holding the stacked matmul RHS
        x = x_ref[0]
        masks = m_ref[...]
        w1 = w1_ref[...]
        w2 = w2_ref[...]

        def conv3x3(inp, w, b):
            # out[s] needs inp[s + (dh-1)*W + (dw-1)] for each tap: a circular
            # lane roll (XLU) whose out-of-image wrap positions are zeroed by
            # the precomputed masks.  Taps are stacked on sublanes and the
            # channel reduction is one (NbC, 9*NbC) x (9*NbC, HW) MXU dot.
            for k in range(n_taps):
                s = shifts[k]
                tap = inp if s == 0 else pltpu.roll(inp, shift=s, axis=1)
                taps_ref[k * NbC:(k + 1) * NbC, :] = tap
            taps = taps_ref[...] * masks
            return jnp.dot(w, taps, preferred_element_type=jnp.float32) + b

        y1 = jnp.maximum(conv3x3(x, w1, b1_ref[...]), 0.0)    # conv1 + ReLU
        y2 = conv3x3(y1, w2, b2_ref[...])                     # conv2 + bias
        o_ref[0] = jnp.maximum(x + y2, 0.0)                   # skip + ReLU

    return kernel


def residual_block(x_nchw, w1, b1, w2, b2):
    """x_nchw: (N, C, H, W); w*: (C, C, 3, 3) OIHW; b*: (C,). Returns NCHW."""
    N, C, H, W = x_nchw.shape
    HW = H * W
    Nb = _pick_batch_pack(N, C)
    G = N // Nb
    NbC = Nb * C

    # Free contiguous reshape: Nb images per block, all their channels on the
    # sublane axis, flattened spatial index on the (lane-dense) lane axis.
    xb = x_nchw.reshape(G, NbC, HW).astype(jnp.float32)

    # --- hoisted border masks (computed once, constant across the grid) ----
    pos = jnp.arange(HW, dtype=jnp.int32)
    r, c = pos // W, pos % W
    ones = jnp.ones((HW,), jnp.float32)
    rmask = [(r >= 1).astype(jnp.float32), ones, (r <= H - 2).astype(jnp.float32)]
    cmask = [(c >= 1).astype(jnp.float32), ones, (c <= W - 2).astype(jnp.float32)]
    masks9 = jnp.stack([rmask[dh] * cmask[dw]
                        for dh in range(3) for dw in range(3)])       # (9, HW)
    masks = jnp.broadcast_to(masks9[:, None, :],
                             (9, NbC, HW)).reshape(9 * NbC, HW)

    # Lane shift per tap (k = dh*3 + dw), matching the weight packing below.
    shifts = [((1 - dh) * W + (1 - dw)) % HW
              for dh in range(3) for dw in range(3)]

    # --- pack weights: block-diagonal (NbC, 9*NbC) matmul LHS --------------
    eye = jnp.eye(Nb, dtype=jnp.float32)

    def prep_w(w):  # OIHW (co, ci, kh, kw) -> row n*C+co, col k*NbC + n*C + ci
        w3 = jnp.transpose(w.astype(jnp.float32), (0, 2, 3, 1)).reshape(C, 9, C)
        wbig = jnp.einsum('nm,oki->nokmi', eye, w3)
        return wbig.reshape(NbC, 9 * NbC)

    def prep_b(b):
        return jnp.tile(b.astype(jnp.float32), Nb).reshape(NbC, 1)

    w1b, w2b = prep_w(w1), prep_w(w2)
    b1b, b2b = prep_b(b1), prep_b(b2)

    # NOTE(large images): add a row-strip grid axis (1-row halo via index_map)
    # sized so 2x(input+halo) + 2x(output) blocks stay under the scoped-VMEM
    # default, with >= 4-8 strip steps and a lane dim >= 512; re-derive the
    # strip height separately for v7x (64 MiB VMEM, ~3.2 TB/s HBM) and try
    # pipeline_mode=pl.Buffered(3) on the input spec if the DMA becomes
    # exposed.  At 16x16x4 f32 per image, one (or Nb) images per step is fine.
    out = pl.pallas_call(
        _make_residual_block_kernel(NbC, HW, shifts),
        out_shape=jax.ShapeDtypeStruct((G, NbC, HW), jnp.float32),
        grid_spec=pltpu.PrefetchScalarGridSpec(
            num_scalar_prefetch=0,
            grid=(G,),
            in_specs=[
                pl.BlockSpec((1, NbC, HW), lambda g: (g, 0, 0)),
                pl.BlockSpec((9 * NbC, HW), lambda g: (0, 0)),
                pl.BlockSpec((NbC, 9 * NbC), lambda g: (0, 0)),
                pl.BlockSpec((NbC, 1), lambda g: (0, 0)),
                pl.BlockSpec((NbC, 9 * NbC), lambda g: (0, 0)),
                pl.BlockSpec((NbC, 1), lambda g: (0, 0)),
            ],
            out_specs=pl.BlockSpec((1, NbC, HW), lambda g: (g, 0, 0)),
            scratch_shapes=[pltpu.VMEM((9 * NbC, HW), jnp.float32)],
        ),
        compiler_params=pltpu.CompilerParams(
            dimension_semantics=("parallel",)),
    )(xb, masks, w1b, b1b, w2b, b2b)

    return out.reshape(N, C, H, W)


def residual_block_reference(x, w1, b1, w2, b2):
    """Pure-JAX reference matching torch semantics (NCHW / OIHW)."""
    def conv(x, w, b):
        y = jax.lax.conv_general_dilated(
            x, w, window_strides=(1, 1), padding=((1, 1), (1, 1)),
            dimension_numbers=("NCHW", "OIHW", "NCHW"))
        return y + b[None, :, None, None]
    y = jax.nn.relu(conv(x, w1, b1))
    y = conv(y, w2, b2)
    return jax.nn.relu(x + y)


if __name__ == "__main__":
    key = jax.random.PRNGKey(0)
    C, H, W = 4, 16, 16
    # N=4 exercises the packed path (Nb=2, 8 full sublanes, 2 grid steps for
    # both v7x TCs); N=2 exercises the one-image-per-core fallback (Nb=1).
    for N in (4, 2):
        kx, k1, k2, k3, k4 = jax.random.split(jax.random.fold_in(key, N), 5)
        bound = 1.0 / jnp.sqrt(C * 3 * 3)
        x = jax.random.normal(kx, (N, C, H, W), jnp.float32)
        w1 = jax.random.uniform(k1, (C, C, 3, 3), jnp.float32, -bound, bound)
        b1 = jax.random.uniform(k2, (C,), jnp.float32, -bound, bound)
        w2 = jax.random.uniform(k3, (C, C, 3, 3), jnp.float32, -bound, bound)
        b2 = jax.random.uniform(k4, (C,), jnp.float32, -bound, bound)

        out = jax.block_until_ready(residual_block(x, w1, b1, w2, b2))
        ref = jax.block_until_ready(residual_block_reference(x, w1, b1, w2, b2))

        if not jnp.allclose(out, ref, atol=1e-4, rtol=1e-4):
            raise AssertionError(
                f"Pallas residual block does not match reference at N={N}")
    print("KERNEL_OK")
</pallas_src>

<mosaic_0001>
module attributes {stable_mosaic.version = 11 : i64} {
  func.func @kernel(%arg0: i32, %arg1: memref<1x8x256xf32, #tpu.memory_space<vmem>>, %arg2: memref<72x256xf32, #tpu.memory_space<vmem>>, %arg3: memref<8x72xf32, #tpu.memory_space<vmem>>, %arg4: memref<8x1xf32, #tpu.memory_space<vmem>>, %arg5: memref<8x72xf32, #tpu.memory_space<vmem>>, %arg6: memref<8x1xf32, #tpu.memory_space<vmem>>, %arg7: memref<1x8x256xf32, #tpu.memory_space<vmem>>, %arg8: memref<72x256xf32, #tpu.memory_space<vmem>>) attributes {dimension_semantics = [#tpu.dimension_semantics<parallel>], iteration_bounds = array<i64: 2>, scalar_prefetch = 0 : i64, scratch_operands = 1 : i64, tpu.core_type = #tpu.core_type<tc>, window_params = [{transform_indices = @transform_0, window_bounds = array<i64: 1, 8, 256>}, {pipeline_mode = #tpu.pipeline_mode<synchronous>, transform_indices = @transform_1, window_bounds = array<i64: 72, 256>}, {pipeline_mode = #tpu.pipeline_mode<synchronous>, transform_indices = @transform_2, window_bounds = array<i64: 8, 72>}, {pipeline_mode = #tpu.pipeline_mode<synchronous>, transform_indices = @transform_3, window_bounds = array<i64: 8, 1>}, {pipeline_mode = #tpu.pipeline_mode<synchronous>, transform_indices = @transform_4, window_bounds = array<i64: 8, 72>}, {pipeline_mode = #tpu.pipeline_mode<synchronous>, transform_indices = @transform_5, window_bounds = array<i64: 8, 1>}, {transform_indices = @transform_6, window_bounds = array<i64: 1, 8, 256>}]} {
    %c0 = arith.constant 0 : index
    %c0_0 = arith.constant 0 : index
    %c0_1 = arith.constant 0 : index
    %0 = vector.load %arg1[%c0, %c0_0, %c0_1] : memref<1x8x256xf32, #tpu.memory_space<vmem>>, vector<1x8x256xf32>
    %1 = vector.shape_cast %0 : vector<1x8x256xf32> to vector<8x256xf32>
    %c0_2 = arith.constant 0 : index
    %c0_3 = arith.constant 0 : index
    %2 = vector.load %arg2[%c0_2, %c0_3] : memref<72x256xf32, #tpu.memory_space<vmem>>, vector<72x256xf32>
    %c0_4 = arith.constant 0 : index
    %c0_5 = arith.constant 0 : index
    %3 = vector.load %arg3[%c0_4, %c0_5] : memref<8x72xf32, #tpu.memory_space<vmem>>, vector<8x72xf32>
    %c0_6 = arith.constant 0 : index
    %c0_7 = arith.constant 0 : index
    %4 = vector.load %arg5[%c0_6, %c0_7] : memref<8x72xf32, #tpu.memory_space<vmem>>, vector<8x72xf32>
    %c0_8 = arith.constant 0 : index
    %c0_9 = arith.constant 0 : index
    %5 = vector.load %arg4[%c0_8, %c0_9] : memref<8x1xf32, #tpu.memory_space<vmem>>, vector<8x1xf32>
    %c17_i32 = arith.constant 17 : i32
    %6 = tpu.dynamic_rotate %1 by %c17_i32 dim 1 : vector<8x256xf32>, i32 -> vector<8x256xf32>
    %c0_10 = arith.constant 0 : index
    %c0_11 = arith.constant 0 : index
    %7 = vector.load %arg8[%c0_10, %c0_11] : memref<72x256xf32, #tpu.memory_space<vmem>>, vector<8x256xf32>
    tpu.vector_store %arg8[%c0_10, %c0_11], %6 {strides = array<i32>} : memref<72x256xf32, #tpu.memory_space<vmem>>, vector<8x256xf32>,
    %c16_i32 = arith.constant 16 : i32
    %8 = tpu.dynamic_rotate %1 by %c16_i32 dim 1 : vector<8x256xf32>, i32 -> vector<8x256xf32>
    %c8 = arith.constant 8 : index
    %c0_12 = arith.constant 0 : index
    %9 = vector.load %arg8[%c8, %c0_12] : memref<72x256xf32, #tpu.memory_space<vmem>>, vector<8x256xf32>
    tpu.vector_store %arg8[%c8, %c0_12], %8 {strides = array<i32>} : memref<72x256xf32, #tpu.memory_space<vmem>>, vector<8x256xf32>,
    %c15_i32 = arith.constant 15 : i32
    %10 = tpu.dynamic_rotate %1 by %c15_i32 dim 1 : vector<8x256xf32>, i32 -> vector<8x256xf32>
    %c16 = arith.constant 16 : index
    %c0_13 = arith.constant 0 : index
    %11 = vector.load %arg8[%c16, %c0_13] : memref<72x256xf32, #tpu.memory_space<vmem>>, vector<8x256xf32>
    tpu.vector_store %arg8[%c16, %c0_13], %10 {strides = array<i32>} : memref<72x256xf32, #tpu.memory_space<vmem>>, vector<8x256xf32>,
    %c1_i32 = arith.constant 1 : i32
    %12 = tpu.dynamic_rotate %1 by %c1_i32 dim 1 : vector<8x256xf32>, i32 -> vector<8x256xf32>
    %c24 = arith.constant 24 : index
    %c0_14 = arith.constant 0 : index
    %13 = vector.load %arg8[%c24, %c0_14] : memref<72x256xf32, #tpu.memory_space<vmem>>, vector<8x256xf32>
    tpu.vector_store %arg8[%c24, %c0_14], %12 {strides = array<i32>} : memref<72x256xf32, #tpu.memory_space<vmem>>, vector<8x256xf32>,
    %c32 = arith.constant 32 : index
    %c0_15 = arith.constant 0 : index
    %14 = vector.load %arg8[%c32, %c0_15] : memref<72x256xf32, #tpu.memory_space<vmem>>, vector<8x256xf32>
    tpu.vector_store %arg8[%c32, %c0_15], %1 {strides = array<i32>} : memref<72x256xf32, #tpu.memory_space<vmem>>, vector<8x256xf32>,
    %c255_i32 = arith.constant 255 : i32
    %15 = tpu.dynamic_rotate %1 by %c255_i32 dim 1 : vector<8x256xf32>, i32 -> vector<8x256xf32>
    %c40 = arith.constant 40 : index
    %c0_16 = arith.constant 0 : index
    %16 = vector.load %arg8[%c40, %c0_16] : memref<72x256xf32, #tpu.memory_space<vmem>>, vector<8x256xf32>
    tpu.vector_store %arg8[%c40, %c0_16], %15 {strides = array<i32>} : memref<72x256xf32, #tpu.memory_space<vmem>>, vector<8x256xf32>,
    %c241_i32 = arith.constant 241 : i32
    %17 = tpu.dynamic_rotate %1 by %c241_i32 dim 1 : vector<8x256xf32>, i32 -> vector<8x256xf32>
    %c48 = arith.constant 48 : index
    %c0_17 = arith.constant 0 : index
    %18 = vector.load %arg8[%c48, %c0_17] : memref<72x256xf32, #tpu.memory_space<vmem>>, vector<8x256xf32>
    tpu.vector_store %arg8[%c48, %c0_17], %17 {strides = array<i32>} : memref<72x256xf32, #tpu.memory_space<vmem>>, vector<8x256xf32>,
    %c240_i32 = arith.constant 240 : i32
    %19 = tpu.dynamic_rotate %1 by %c240_i32 dim 1 : vector<8x256xf32>, i32 -> vector<8x256xf32>
    %c56 = arith.constant 56 : index
    %c0_18 = arith.constant 0 : index
    %20 = vector.load %arg8[%c56, %c0_18] : memref<72x256xf32, #tpu.memory_space<vmem>>, vector<8x256xf32>
    tpu.vector_store %arg8[%c56, %c0_18], %19 {strides = array<i32>} : memref<72x256xf32, #tpu.memory_space<vmem>>, vector<8x256xf32>,
    %c239_i32 = arith.constant 239 : i32
    %21 = tpu.dynamic_rotate %1 by %c239_i32 dim 1 : vector<8x256xf32>, i32 -> vector<8x256xf32>
    %c64 = arith.constant 64 : index
    %c0_19 = arith.constant 0 : index
    %22 = vector.load %arg8[%c64, %c0_19] : memref<72x256xf32, #tpu.memory_space<vmem>>, vector<8x256xf32>
    tpu.vector_store %arg8[%c64, %c0_19], %21 {strides = array<i32>} : memref<72x256xf32, #tpu.memory_space<vmem>>, vector<8x256xf32>,
    %c0_20 = arith.constant 0 : index
    %c0_21 = arith.constant 0 : index
    %23 = vector.load %arg8[%c0_20, %c0_21] : memref<72x256xf32, #tpu.memory_space<vmem>>, vector<72x256xf32>
    %24 = arith.mulf %23, %2 : vector<72x256xf32>
    %cst = arith.constant dense<0.000000e+00> : vector<8x256xf32>
    %25 = tpu.matmul %3, %24, %cst {dimension_numbers = #tpu.dot_dimension_numbers<[1], [0], [0], [1], [0, 0, 1, 1], [], []>} : vector<8x72xf32>, vector<72x256xf32>, vector<8x256xf32> -> vector<8x256xf32>
    %26 = vector.broadcast %5 : vector<8x1xf32> to vector<8x256xf32>
    %27 = arith.addf %25, %26 : vector<8x256xf32>
    %cst_22 = arith.constant 0.000000e+00 : f32
    %28 = vector.broadcast %cst_22 : f32 to vector<8x256xf32>
    %29 = arith.maximumf %27, %28 : vector<8x256xf32>
    %c0_23 = arith.constant 0 : index
    %c0_24 = arith.constant 0 : index
    %30 = vector.load %arg6[%c0_23, %c0_24] : memref<8x1xf32, #tpu.memory_space<vmem>>, vector<8x1xf32>
    %c17_i32_25 = arith.constant 17 : i32
    %31 = tpu.dynamic_rotate %29 by %c17_i32_25 dim 1 : vector<8x256xf32>, i32 -> vector<8x256xf32>
    %c0_26 = arith.constant 0 : index
    %c0_27 = arith.constant 0 : index
    %32 = vector.load %arg8[%c0_26, %c0_27] : memref<72x256xf32, #tpu.memory_space<vmem>>, vector<8x256xf32>
    tpu.vector_store %arg8[%c0_26, %c0_27], %31 {strides = array<i32>} : memref<72x256xf32, #tpu.memory_space<vmem>>, vector<8x256xf32>,
    %c16_i32_28 = arith.constant 16 : i32
    %33 = tpu.dynamic_rotate %29 by %c16_i32_28 dim 1 : vector<8x256xf32>, i32 -> vector<8x256xf32>
    %c8_29 = arith.constant 8 : index
    %c0_30 = arith.constant 0 : index
    %34 = vector.load %arg8[%c8_29, %c0_30] : memref<72x256xf32, #tpu.memory_space<vmem>>, vector<8x256xf32>
    tpu.vector_store %arg8[%c8_29, %c0_30], %33 {strides = array<i32>} : memref<72x256xf32, #tpu.memory_space<vmem>>, vector<8x256xf32>,
    %c15_i32_31 = arith.constant 15 : i32
    %35 = tpu.dynamic_rotate %29 by %c15_i32_31 dim 1 : vector<8x256xf32>, i32 -> vector<8x256xf32>
    %c16_32 = arith.constant 16 : index
    %c0_33 = arith.constant 0 : index
    %36 = vector.load %arg8[%c16_32, %c0_33] : memref<72x256xf32, #tpu.memory_space<vmem>>, vector<8x256xf32>
    tpu.vector_store %arg8[%c16_32, %c0_33], %35 {strides = array<i32>} : memref<72x256xf32, #tpu.memory_space<vmem>>, vector<8x256xf32>,
    %c1_i32_34 = arith.constant 1 : i32
    %37 = tpu.dynamic_rotate %29 by %c1_i32_34 dim 1 : vector<8x256xf32>, i32 -> vector<8x256xf32>
    %c24_35 = arith.constant 24 : index
    %c0_36 = arith.constant 0 : index
    %38 = vector.load %arg8[%c24_35, %c0_36] : memref<72x256xf32, #tpu.memory_space<vmem>>, vector<8x256xf32>
    tpu.vector_store %arg8[%c24_35, %c0_36], %37 {strides = array<i32>} : memref<72x256xf32, #tpu.memory_space<vmem>>, vector<8x256xf32>,
    %c32_37 = arith.constant 32 : index
    %c0_38 = arith.constant 0 : index
    %39 = vector.load %arg8[%c32_37, %c0_38] : memref<72x256xf32, #tpu.memory_space<vmem>>, vector<8x256xf32>
    tpu.vector_store %arg8[%c32_37, %c0_38], %29 {strides = array<i32>} : memref<72x256xf32, #tpu.memory_space<vmem>>, vector<8x256xf32>,
    %c255_i32_39 = arith.constant 255 : i32
    %40 = tpu.dynamic_rotate %29 by %c255_i32_39 dim 1 : vector<8x256xf32>, i32 -> vector<8x256xf32>
    %c40_40 = arith.constant 40 : index
    %c0_41 = arith.constant 0 : index
    %41 = vector.load %arg8[%c40_40, %c0_41] : memref<72x256xf32, #tpu.memory_space<vmem>>, vector<8x256xf32>
    tpu.vector_store %arg8[%c40_40, %c0_41], %40 {strides = array<i32>} : memref<72x256xf32, #tpu.memory_space<vmem>>, vector<8x256xf32>,
    %c241_i32_42 = arith.constant 241 : i32
    %42 = tpu.dynamic_rotate %29 by %c241_i32_42 dim 1 : vector<8x256xf32>, i32 -> vector<8x256xf32>
    %c48_43 = arith.constant 48 : index
    %c0_44 = arith.constant 0 : index
    %43 = vector.load %arg8[%c48_43, %c0_44] : memref<72x256xf32, #tpu.memory_space<vmem>>, vector<8x256xf32>
    tpu.vector_store %arg8[%c48_43, %c0_44], %42 {strides = array<i32>} : memref<72x256xf32, #tpu.memory_space<vmem>>, vector<8x256xf32>,
    %c240_i32_45 = arith.constant 240 : i32
    %44 = tpu.dynamic_rotate %29 by %c240_i32_45 dim 1 : vector<8x256xf32>, i32 -> vector<8x256xf32>
    %c56_46 = arith.constant 56 : index
    %c0_47 = arith.constant 0 : index
    %45 = vector.load %arg8[%c56_46, %c0_47] : memref<72x256xf32, #tpu.memory_space<vmem>>, vector<8x256xf32>
    tpu.vector_store %arg8[%c56_46, %c0_47], %44 {strides = array<i32>} : memref<72x256xf32, #tpu.memory_space<vmem>>, vector<8x256xf32>,
    %c239_i32_48 = arith.constant 239 : i32
    %46 = tpu.dynamic_rotate %29 by %c239_i32_48 dim 1 : vector<8x256xf32>, i32 -> vector<8x256xf32>
    %c64_49 = arith.constant 64 : index
    %c0_50 = arith.constant 0 : index
    %47 = vector.load %arg8[%c64_49, %c0_50] : memref<72x256xf32, #tpu.memory_space<vmem>>, vector<8x256xf32>
    tpu.vector_store %arg8[%c64_49, %c0_50], %46 {strides = array<i32>} : memref<72x256xf32, #tpu.memory_space<vmem>>, vector<8x256xf32>,
    %c0_51 = arith.constant 0 : index
    %c0_52 = arith.constant 0 : index
    %48 = vector.load %arg8[%c0_51, %c0_52] : memref<72x256xf32, #tpu.memory_space<vmem>>, vector<72x256xf32>
    %49 = arith.mulf %48, %2 : vector<72x256xf32>
    %cst_53 = arith.constant dense<0.000000e+00> : vector<8x256xf32>
    %50 = tpu.matmul %4, %49, %cst_53 {dimension_numbers = #tpu.dot_dimension_numbers<[1], [0], [0], [1], [0, 0, 1, 1], [], []>} : vector<8x72xf32>, vector<72x256xf32>, vector<8x256xf32> -> vector<8x256xf32>
    %51 = vector.broadcast %30 : vector<8x1xf32> to vector<8x256xf32>
    %52 = arith.addf %50, %51 : vector<8x256xf32>
    %53 = arith.addf %1, %52 : vector<8x256xf32>
    %cst_54 = arith.constant 0.000000e+00 : f32
    %54 = vector.broadcast %cst_54 : f32 to vector<8x256xf32>
    %55 = arith.maximumf %53, %54 : vector<8x256xf32>
    %c0_55 = arith.constant 0 : index
    %c0_56 = arith.constant 0 : index
    %c0_57 = arith.constant 0 : index
    %56 = vector.load %arg7[%c0_55, %c0_56, %c0_57] : memref<1x8x256xf32, #tpu.memory_space<vmem>>, vector<1x8x256xf32>
    %57 = vector.shape_cast %56 : vector<1x8x256xf32> to vector<8x256xf32>
    %58 = vector.shape_cast %55 : vector<8x256xf32> to vector<1x8x256xf32>
    tpu.vector_store %arg7[%c0_55, %c0_56, %c0_57], %58 {strides = array<i32>} : memref<1x8x256xf32, #tpu.memory_space<vmem>>, vector<1x8x256xf32>,
    return
  }
  func.func @transform_0(%arg0: i32) -> (i32, i32, i32) {
    %c0_i32 = arith.constant 0 : i32
    %c0_i32_0 = arith.constant 0 : i32
    %c0_i32_1 = arith.constant 0 : i32
    return %arg0, %c0_i32, %c0_i32_0 : i32, i32, i32
  }
  func.func @transform_1(%arg0: i32) -> (i32, i32) {
    %c0_i32 = arith.constant 0 : i32
    %c0_i32_0 = arith.constant 0 : i32
    %c0_i32_1 = arith.constant 0 : i32
    return %c0_i32, %c0_i32_0 : i32, i32
  }
  func.func @transform_2(%arg0: i32) -> (i32, i32) {
    %c0_i32 = arith.constant 0 : i32
    %c0_i32_0 = arith.constant 0 : i32
    %c0_i32_1 = arith.constant 0 : i32
    return %c0_i32, %c0_i32_0 : i32, i32
  }
  func.func @transform_3(%arg0: i32) -> (i32, i32) {
    %c0_i32 = arith.constant 0 : i32
    %c0_i32_0 = arith.constant 0 : i32
    %c0_i32_1 = arith.constant 0 : i32
    return %c0_i32, %c0_i32_0 : i32, i32
  }
  func.func @transform_4(%arg0: i32) -> (i32, i32) {
    %c0_i32 = arith.constant 0 : i32
    %c0_i32_0 = arith.constant 0 : i32
    %c0_i32_1 = arith.constant 0 : i32
    return %c0_i32, %c0_i32_0 : i32, i32
  }
  func.func @transform_5(%arg0: i32) -> (i32, i32) {
    %c0_i32 = arith.constant 0 : i32
    %c0_i32_0 = arith.constant 0 : i32
    %c0_i32_1 = arith.constant 0 : i32
    return %c0_i32, %c0_i32_0 : i32, i32
  }
  func.func @transform_6(%arg0: i32) -> (i32, i32, i32) {
    %c0_i32 = arith.constant 0 : i32
    %c0_i32_0 = arith.constant 0 : i32
    %c0_i32_1 = arith.constant 0 : i32
    return %arg0, %c0_i32, %c0_i32_0 : i32, i32, i32
  }
}

</mosaic_0001>

<llo_original>
// kernel: tpu_custom_call.1
$region0: #{tpu_custom_call.1}
  #allocation0 [shape = 'u32[]', space=smem, size = 0x4, offset = 0x4, fixed_abs, tag = 'smem constant byte address 0x4 - core index']
  #allocation1 [shape = 'u32[144,128]{1,0:T(1,128)}', space=vmem, size = 0x12000, scoped, tag = 'internal scratch']
  #allocation2 [shape = 'f32[72,256]{1,0:T(8,128)}', space=vmem, size = 0x12000, scoped, tag = 'scratch operand']
  %s0 = inlined_call_operand.hbm [shape: f32[2,8,256], index: 0, kind: input, shape index: {}]
  %s1 = inlined_call_operand.hbm [shape: f32[72,256], index: 1, kind: input, shape index: {}]
  %s2 = inlined_call_operand.vmem [shape: f32[8,72], index: 2, kind: input, shape index: {}]
  %s3 = inlined_call_operand.vmem [shape: f32[8,1], index: 3, kind: input, shape index: {}]
  %s4 = inlined_call_operand.vmem [shape: f32[8,72], index: 4, kind: input, shape index: {}]
  %s5 = inlined_call_operand.vmem [shape: f32[8,1], index: 5, kind: input, shape index: {}]
  %s6 = inlined_call_operand.hbm [shape: f32[2,8,256], index: 6, kind: output, shape index: {}]
  %s7 = sld [smem:[#allocation0]]
  $region65: #{tpu_custom_call.1} parent=0
    _
  %s9 = ssub.s32 1, %s7
  %s10 = scalar_select 0, %s9, %s7
  $region1: #{tpu_custom_call.1} parent=0
    #allocation3 [shape = 'u8[16384]{0}', space=vmem, size = 0x4000, scoped, tag = 'input window, operand 0']
    #allocation4 [shape = 's32[2]{0}', space=sflag, size = 0x8, scoped, tag = 'scoped memory for tpu_custom_call.1']
    #allocation5 [shape = 's32[2]{0}', space=sflag, size = 0x8, scoped, tag = 'scoped memory for tpu_custom_call.1']
    #allocation6 [shape = 'u8[73728]{0}', space=vmem, size = 0x12000, scoped, tag = 'input window, operand 1, single buffered']
    #allocation7 [shape = 's32[1]{0}', space=sflag, size = 0x4, scoped, tag = 'scoped memory for tpu_custom_call.1']
    #allocation8 [shape = 'u8[16384]{0}', space=vmem, size = 0x4000, scoped, tag = 'output window, operand 0']
    %11 = vsyncpa [#allocation4], 0
    %s12 = scalar_lea.sflag [#allocation4], 1
    %13 = vsyncpa %s12, 0
    %14 = vsyncpa [#allocation7], 0
    %15 = vsyncpa [#allocation5], 0
    %s16 = scalar_lea.sflag [#allocation5], 1
    %17 = vsyncpa %s16, 0
    loop: start=0, step=1, limit=4
    $region2: #{tpu_custom_call.1} parent=1 // loop_pre_header
      _
    $region3: #{tpu_custom_call.1} parent=1 // loop_header
      %s19 = sphi 0, %s23
      %p20 = scmp.ge.s32.totalorder %s19, 4
      %s29 = sphi 0, %s31
      %s32 = sphi 0, %s29
      %s33 = sphi 0, %s32
      %s49 = sphi 0, %s33
      %s53 = sphi 0, %s53
      %s55 = sphi 0, %s53
      %s56 = sphi 0, %s55
      %s70 = sphi 0, %s56
      %s74 = sphi 0, %s74
      %s76 = sphi 0, %s74
      %s77 = sphi 0, %s76
      %s91 = sphi 0, %s77
      %s95 = sphi 0, %s95
      %s97 = sphi 0, %s95
      %s98 = sphi 0, %s97
      %s112 = sphi 0, %s98
      %s116 = sphi 0, %s116
      %s118 = sphi 0, %s116
      %s119 = sphi 0, %s118
      %s133 = sphi 0, %s119
      %s137 = sphi 0, %s137
      %s139 = sphi 0, %s137
      %s140 = sphi 0, %s139
      %s154 = sphi 0, %s140
      %s160 = sphi 0, %s162
      %s163 = sphi 0, %s160
      %s164 = sphi 0, %s163
      %s180 = sphi 0, %s164
    $region4: #{tpu_custom_call.1} parent=1 // loop_header_branch
      %22 = sbr.rel (%p20) target = $region8
    $region5: #{tpu_custom_call.1} parent=1 // loop_body
      %s24 = ssub.s32 %s19, 1
      %s25 = ssub.s32 %s19, 2
      %s26 = sadd.s32 %s19, 1
      %s27 = ssub.s32 %s19, %s26
      %p28 = scmp.eq.s32.totalorder %s27, 0
      %s30 = sadd.s32 %s29, 1
      %s31 = scalar_select %p28, %s29, %s30
      %p34 = pneg %p28
      %p35 = scmp.eq.s32.totalorder %s19, 1
      %p36 = por %p34, %p35
      %p37 = scmp.ne.s32.totalorder %s29, %s32
      %p38 = scmp.eq.s32.totalorder %s19, 0
      %p39 = por %p37, %p38
      %p40 = scmp.ne.s32.totalorder %s29, %s32
      %p41 = scmp.eq.s32.totalorder %s24, 1
      %p42 = por %p40, %p41
      %p43 = scmp.ne.s32.totalorder %s32, %s33
      %p44 = scmp.eq.s32.totalorder %s24, 0
      %p45 = por %p43, %p44
      %p46 = scmp.ne.s32.totalorder %s32, %s33
      %p47 = scmp.eq.s32.totalorder %s25, 1
      %p48 = por %p46, %p47
      %p50 = scmp.ne.s32.totalorder %s33, %s49
      %p51 = scmp.eq.s32.totalorder %s25, 0
      %p52 = por %p50, %p51
      %s54 = sadd.s32 %s53, 1
      %p57 = scmp.eq.s32.totalorder %s19, 1
      %p58 = scmp.ne.s32.totalorder %s53, %s55
      %p59 = scmp.eq.s32.totalorder %s19, 0
      %p60 = por %p58, %p59
      %p61 = scmp.ne.s32.totalorder %s53, %s55
      %p62 = scmp.eq.s32.totalorder %s24, 1
      %p63 = por %p61, %p62
      %p64 = scmp.ne.s32.totalorder %s55, %s56
      %p65 = scmp.eq.s32.totalorder %s24, 0
      %p66 = por %p64, %p65
      %p67 = scmp.ne.s32.totalorder %s55, %s56
      %p68 = scmp.eq.s32.totalorder %s25, 1
      %p69 = por %p67, %p68
      %p71 = scmp.ne.s32.totalorder %s56, %s70
      %p72 = scmp.eq.s32.totalorder %s25, 0
      %p73 = por %p71, %p72
      %s75 = sadd.s32 %s74, 1
      %p78 = scmp.eq.s32.totalorder %s19, 1
      %p79 = scmp.ne.s32.totalorder %s74, %s76
      %p80 = scmp.eq.s32.totalorder %s19, 0
      %p81 = por %p79, %p80
      %p82 = scmp.ne.s32.totalorder %s74, %s76
      %p83 = scmp.eq.s32.totalorder %s24, 1
      %p84 = por %p82, %p83
      %p85 = scmp.ne.s32.totalorder %s76, %s77
      %p86 = scmp.eq.s32.totalorder %s24, 0
      %p87 = por %p85, %p86
      %p88 = scmp.ne.s32.totalorder %s76, %s77
      %p89 = scmp.eq.s32.totalorder %s25, 1
      %p90 = por %p88, %p89
      %p92 = scmp.ne.s32.totalorder %s77, %s91
      %p93 = scmp.eq.s32.totalorder %s25, 0
      %p94 = por %p92, %p93
      %s96 = sadd.s32 %s95, 1
      %p99 = scmp.eq.s32.totalorder %s19, 1
      %p100 = scmp.ne.s32.totalorder %s95, %s97
      %p101 = scmp.eq.s32.totalorder %s19, 0
      %p102 = por %p100, %p101
      %p103 = scmp.ne.s32.totalorder %s95, %s97
      %p104 = scmp.eq.s32.totalorder %s24, 1
      %p105 = por %p103, %p104
      %p106 = scmp.ne.s32.totalorder %s97, %s98
      %p107 = scmp.eq.s32.totalorder %s24, 0
      %p108 = por %p106, %p107
      %p109 = scmp.ne.s32.totalorder %s97, %s98
      %p110 = scmp.eq.s32.totalorder %s25, 1
      %p111 = por %p109, %p110
      %p113 = scmp.ne.s32.totalorder %s98, %s112
      %p114 = scmp.eq.s32.totalorder %s25, 0
      %p115 = por %p113, %p114
      %s117 = sadd.s32 %s116, 1
      %p120 = scmp.eq.s32.totalorder %s19, 1
      %p121 = scmp.ne.s32.totalorder %s116, %s118
      %p122 = scmp.eq.s32.totalorder %s19, 0
      %p123 = por %p121, %p122
      %p124 = scmp.ne.s32.totalorder %s116, %s118
      %p125 = scmp.eq.s32.totalorder %s24, 1
      %p126 = por %p124, %p125
      %p127 = scmp.ne.s32.totalorder %s118, %s119
      %p128 = scmp.eq.s32.totalorder %s24, 0
      %p129 = por %p127, %p128
      %p130 = scmp.ne.s32.totalorder %s118, %s119
      %p131 = scmp.eq.s32.totalorder %s25, 1
      %p132 = por %p130, %p131
      %p134 = scmp.ne.s32.totalorder %s119, %s133
      %p135 = scmp.eq.s32.totalorder %s25, 0
      %p136 = por %p134, %p135
      %s138 = sadd.s32 %s137, 1
      %p141 = scmp.eq.s32.totalorder %s19, 1
      %p142 = scmp.ne.s32.totalorder %s137, %s139
      %p143 = scmp.eq.s32.totalorder %s19, 0
      %p144 = por %p142, %p143
      %p145 = scmp.ne.s32.totalorder %s137, %s139
      %p146 = scmp.eq.s32.totalorder %s24, 1
      %p147 = por %p145, %p146
      %p148 = scmp.ne.s32.totalorder %s139, %s140
      %p149 = scmp.eq.s32.totalorder %s24, 0
      %p150 = por %p148, %p149
      %p151 = scmp.ne.s32.totalorder %s139, %s140
      %p152 = scmp.eq.s32.totalorder %s25, 1
      %p153 = por %p151, %p152
      %p155 = scmp.ne.s32.totalorder %s140, %s154
      %p156 = scmp.eq.s32.totalorder %s25, 0
      %p157 = por %p155, %p156
      %s158 = ssub.s32 %s19, %s26
      %p159 = scmp.eq.s32.totalorder %s158, 0
      %s161 = sadd.s32 %s160, 1
      %s162 = scalar_select %p159, %s160, %s161
      %p165 = pneg %p159
      %p166 = scmp.eq.s32.totalorder %s19, 1
      %p167 = por %p165, %p166
      %p168 = scmp.ne.s32.totalorder %s160, %s163
      %p169 = scmp.eq.s32.totalorder %s19, 0
      %p170 = por %p168, %p169
      %p171 = scmp.ne.s32.totalorder %s160, %s163
      %p172 = scmp.eq.s32.totalorder %s24, 1
      %p173 = por %p171, %p172
      %p174 = scmp.ne.s32.totalorder %s163, %s164
      %p175 = scmp.eq.s32.totalorder %s24, 0
      %p176 = por %p174, %p175
      %p177 = scmp.ne.s32.totalorder %s163, %s164
      %p178 = scmp.eq.s32.totalorder %s25, 1
      %p179 = por %p177, %p178
      %p181 = scmp.ne.s32.totalorder %s164, %s180
      %p182 = scmp.eq.s32.totalorder %s25, 0
      %p183 = por %p181, %p182
      %p184 = scmp.le.s32.totalorder 1, %s19
      %p185 = scmp.lt.s32.totalorder %s19, 3
      %p186 = pnand %p184, %p185
      %p187 = pneg %p186
      // Predicated region
      $region9: #{tpu_custom_call.1} parent=5 // pred_check
        _
      $region10: #{tpu_custom_call.1} parent=5 // pred_check_branch
        %189 = sbr.rel (%p186) target = $region12
      $region11: #{tpu_custom_call.1} parent=5 // pred_region
        %s190 = ssub.s32 %s19, 1
        // Predicated region
        $region13: #{tpu_custom_call.1} parent=11 // pred_check
          %p191 = pneg %p66
        $region14: #{tpu_custom_call.1} parent=11 // pred_check_branch
          %193 = sbr.rel (%p191) target = $region16
        $region15: #{tpu_custom_call.1} parent=11 // pred_region
          %s195 = ssub.s32 2304, 2304
          %196 = vsyncadd [#allocation7], %s195
          %s197 = sshll.u32 [#allocation6], 4
          %s198 = int_to_ptr.vmem [resolvable:$true] %s197
          %203 = dma.hbm_to_vmem [thread:$0]  %s1, 2304, %s198, [#allocation7], 256, 256, 16
        $region16: #{tpu_custom_call.1} parent=11 // pred_fallthru
          _
        // Predicated region
        $region17: #{tpu_custom_call.1} parent=11 // pred_check
          %p204 = pneg %p87
        $region18: #{tpu_custom_call.1} parent=11 // pred_check_branch
          %206 = sbr.rel (%p204) target = $region20
        $region19: #{tpu_custom_call.1} parent=11 // pred_region
          _
        $region20: #{tpu_custom_call.1} parent=11 // pred_fallthru
          _
        // Predicated region
        $region21: #{tpu_custom_call.1} parent=11 // pred_check
          %p207 = pneg %p108
        $region22: #{tpu_custom_call.1} parent=11 // pred_check_branch
          %209 = sbr.rel (%p207) target = $region24
        $region23: #{tpu_custom_call.1} parent=11 // pred_region
          _
        $region24: #{tpu_custom_call.1} parent=11 // pred_fallthru
          _
        // Predicated region
        $region25: #{tpu_custom_call.1} parent=11 // pred_check
          %p210 = pneg %p129
        $region26: #{tpu_custom_call.1} parent=11 // pred_check_branch
          %212 = sbr.rel (%p210) target = $region28
        $region27: #{tpu_custom_call.1} parent=11 // pred_region
          _
        $region28: #{tpu_custom_call.1} parent=11 // pred_fallthru
          _
        // Predicated region
        $region29: #{tpu_custom_call.1} parent=11 // pred_check
          %p213 = pneg %p150
        $region30: #{tpu_custom_call.1} parent=11 // pred_check_branch
          %215 = sbr.rel (%p213) target = $region32
        $region31: #{tpu_custom_call.1} parent=11 // pred_region
          _
        $region32: #{tpu_custom_call.1} parent=11 // pred_fallthru
          _
      $region12: #{tpu_custom_call.1} parent=5 // pred_fallthru
        _
      %p216 = scmp.lt.s32.totalorder %s19, 2
      // Predicated region
      $region33: #{tpu_custom_call.1} parent=5 // pred_check
        %p217 = pneg %p216
      $region34: #{tpu_custom_call.1} parent=5 // pred_check_branch
        %219 = sbr.rel (%p217) target = $region36
      $region35: #{tpu_custom_call.1} parent=5 // pred_region
        // Predicated region
        $region37: #{tpu_custom_call.1} parent=35 // pred_check
          %p220 = pneg %p39
        $region38: #{tpu_custom_call.1} parent=35 // pred_check_branch
          %222 = sbr.rel (%p220) target = $region40
        $region39: #{tpu_custom_call.1} parent=35 // pred_region
          %s223 = sand.u32 %s29, 1
          %s224 = scalar_lea.sflag [#allocation4], %s223
          %s225 = sand.u32 %s29, 1
          %s226 = smul.addr %s225, 16
          %s227 = scalar_lea.vmem [#allocation3], %s226
          %s229 = ssub.s32 256, 256
          %230 = vsyncadd %s224, %s229
          %s231 = smul.addr %s19, 2
          %s232 = smul.addr %s231, 128
          %s233 = scalar_lea.hbm %s0, %s232
          %s235 = sshll.u32 %s227, 4
          %s236 = int_to_ptr.vmem [resolvable:$true] %s235
          %238 = dma.hbm_to_vmem [thread:$0]  %s233, 256, %s236, %s224
        $region40: #{tpu_custom_call.1} parent=35 // pred_fallthru
          _
      $region36: #{tpu_custom_call.1} parent=5 // pred_fallthru
        _
      %p239 = scmp.le.s32.totalorder 1, %s19
      %p240 = scmp.lt.s32.totalorder %s19, 3
      %p241 = pnand %p239, %p240
      %p242 = pneg %p241
      // Predicated region
      $region41: #{tpu_custom_call.1} parent=5 // pred_check
        _
      $region42: #{tpu_custom_call.1} parent=5 // pred_check_branch
        %244 = sbr.rel (%p241) target = $region44
      $region43: #{tpu_custom_call.1} parent=5 // pred_region
        %s245 = ssub.s32 %s19, 1
        %s246 = sand.u32 %s32, 1
        %s247 = scalar_lea.sflag [#allocation4], %s246
        %s248 = sand.u32 %s32, 1
        %s249 = smul.addr %s248, 16
        %s250 = scalar_lea.vmem [#allocation3], %s249
        // Predicated region
        $region45: #{tpu_custom_call.1} parent=43 // pred_check
          %p251 = pneg %p45
        $region46: #{tpu_custom_call.1} parent=43 // pred_check_branch
          %253 = sbr.rel (%p251) target = $region48
        $region47: #{tpu_custom_call.1} parent=43 // pred_region
          %254 = dma.done %s247, 256
        $region48: #{tpu_custom_call.1} parent=43 // pred_fallthru
          _
        // Predicated region
        $region49: #{tpu_custom_call.1} parent=43 // pred_check
          %p255 = pneg %p66
        $region50: #{tpu_custom_call.1} parent=43 // pred_check_branch
          %257 = sbr.rel (%p255) target = $region52
        $region51: #{tpu_custom_call.1} parent=43 // pred_region
          %258 = dma.done [#allocation7], 2304
        $region52: #{tpu_custom_call.1} parent=43 // pred_fallthru
          _
        %s259 = sand.u32 %s32, 1
        %s260 = scalar_lea.sflag [#allocation4], %s259
        %s261 = sand.u32 %s32, 1
        %s262 = smul.addr %s261, 16
        %s263 = scalar_lea.vmem [#allocation3], %s262
        %p264 = pneg %p45
        %p265 = pneg %p42
        %p266 = pneg %p66
        %p267 = pneg %p63
        %p268 = pneg %p87
        %p269 = pneg %p84
        %p270 = pneg %p108
        %p271 = pneg %p105
        %p272 = pneg %p129
        %p273 = pneg %p126
        %p274 = pneg %p150
        %p275 = pneg %p147
        %p276 = pneg %p176
        %p277 = pneg %p173
        %s278 = sand.u32 %s163, 1
        %s279 = scalar_lea.sflag [#allocation5], %s278
        %s280 = sand.u32 %s163, 1
        %s281 = smul.addr %s280, 16
        %s282 = scalar_lea.vmem [#allocation8], %s281
        %v283 = vld [vmem:[%s250] sm:$0xff]
        %v284 = vld [vmem:[%s250 + $0x8] sm:$0xff]
        %v285 = vld [vmem:[#allocation6] sm:$0xff]
        %v286 = vld [vmem:[#allocation6 + $0x8] sm:$0xff]
        %v287 = vld [vmem:[#allocation6 + $0x10] sm:$0xff]
        %v288 = vld [vmem:[#allocation6 + $0x18] sm:$0xff]
        %v289 = vld [vmem:[#allocation6 + $0x20] sm:$0xff]
        %v290 = vld [vmem:[#allocation6 + $0x28] sm:$0xff]
        %v291 = vld [vmem:[#allocation6 + $0x30] sm:$0xff]
        %v292 = vld [vmem:[#allocation6 + $0x38] sm:$0xff]
        %v293 = vld [vmem:[#allocation6 + $0x40] sm:$0xff]
        %v294 = vld [vmem:[#allocation6 + $0x48] sm:$0xff]
        %v295 = vld [vmem:[#allocation6 + $0x50] sm:$0xff]
        %v296 = vld [vmem:[#allocation6 + $0x58] sm:$0xff]
        %v297 = vld [vmem:[#allocation6 + $0x60] sm:$0xff]
        %v298 = vld [vmem:[#allocation6 + $0x68] sm:$0xff]
        %v299 = vld [vmem:[#allocation6 + $0x70] sm:$0xff]
        %v300 = vld [vmem:[#allocation6 + $0x78] sm:$0xff]
        %v301 = vld [vmem:[#allocation6 + $0x80] sm:$0xff]
        %v302 = vld [vmem:[#allocation6 + $0x88] sm:$0xff]
        %v303 = vld [vmem:[%s2] sm:$0xff]
        %v304 = vld [vmem:[%s4] sm:$0xff]
        %v305 = vld [vmem:[%s3] sm:$0xff]
        %306 = vrot.lane.b32.xlu0 %v283, 17
        %v307 = vpop.permute.xlu0 %306
        %308 = vrot.lane.b32.xlu0 %v284, 17
        %v309 = vpop.permute.xlu0 %308
        %v310 = vlaneseq
        %v311 = vand.u32 %v310, 127
        %vm312 = vcmp.lt.s32.totalorder %v311, 17
        %v313 = vsel %vm312, %v307, %v309
        %v314 = vsel %vm312, %v309, %v307
        %315 = vst [vmem:[#allocation2] sm:$0xff] %v314
        %316 = vst [vmem:[#allocation2 + $0x8] sm:$0xff] %v313
        %317 = vrot.lane.b32.xlu0 %v283, 16
        %v318 = vpop.permute.xlu0 %317
        %319 = vrot.lane.b32.xlu0 %v284, 16
        %v320 = vpop.permute.xlu0 %319
        %vm321 = vcmp.lt.s32.totalorder %v311, 16
        %v322 = vsel %vm321, %v318, %v320
        %v323 = vsel %vm321, %v320, %v318
        %324 = vst [vmem:[#allocation2 + $0x10] sm:$0xff] %v323
        %325 = vst [vmem:[#allocation2 + $0x18] sm:$0xff] %v322
        %326 = vrot.lane.b32.xlu0 %v283, 15
        %v327 = vpop.permute.xlu0 %326
        %328 = vrot.lane.b32.xlu0 %v284, 15
        %v329 = vpop.permute.xlu0 %328
        %vm330 = vcmp.lt.s32.totalorder %v311, 15
        %v331 = vsel %vm330, %v327, %v329
        %v332 = vsel %vm330, %v329, %v327
        %333 = vst [vmem:[#allocation2 + $0x20] sm:$0xff] %v332
        %334 = vst [vmem:[#allocation2 + $0x28] sm:$0xff] %v331
        %335 = vrot.lane.b32.xlu0 %v283, 1
        %v336 = vpop.permute.xlu0 %335
        %337 = vrot.lane.b32.xlu0 %v284, 1
        %v338 = vpop.permute.xlu0 %337
        %vm339 = vcmp.lt.s32.totalorder %v311, 1
        %v340 = vsel %vm339, %v336, %v338
        %v341 = vsel %vm339, %v338, %v336
        %342 = vst [vmem:[#allocation2 + $0x30] sm:$0xff] %v341
        %343 = vst [vmem:[#allocation2 + $0x38] sm:$0xff] %v340
        %344 = vst [vmem:[#allocation2 + $0x40] sm:$0xff] %v283
        %345 = vst [vmem:[#allocation2 + $0x48] sm:$0xff] %v284
        %346 = vrot.lane.b32.xlu0 %v283, 127
        %v347 = vpop.permute.xlu0 %346
        %348 = vrot.lane.b32.xlu0 %v284, 127
        %v349 = vpop.permute.xlu0 %348
        %vm350 = vcmp.lt.s32.totalorder %v311, 127
        %v351 = vsel %vm350, %v347, %v349
        %v352 = vsel %vm350, %v349, %v347
        %353 = vst [vmem:[#allocation2 + $0x50] sm:$0xff] %v351
        %354 = vst [vmem:[#allocation2 + $0x58] sm:$0xff] %v352
        %355 = vrot.lane.b32.xlu0 %v283, 113
        %v356 = vpop.permute.xlu0 %355
        %357 = vrot.lane.b32.xlu0 %v284, 113
        %v358 = vpop.permute.xlu0 %357
        %vm359 = vcmp.lt.s32.totalorder %v311, 113
        %v360 = vsel %vm359, %v356, %v358
        %v361 = vsel %vm359, %v358, %v356
        %362 = vst [vmem:[#allocation2 + $0x60] sm:$0xff] %v360
        %363 = vst [vmem:[#allocation2 + $0x68] sm:$0xff] %v361
        %364 = vrot.lane.b32.xlu0 %v283, 112
        %v365 = vpop.permute.xlu0 %364
        %366 = vrot.lane.b32.xlu0 %v284, 112
        %v367 = vpop.permute.xlu0 %366
        %vm368 = vcmp.lt.s32.totalorder %v311, 112
        %v369 = vsel %vm368, %v365, %v367
        %v370 = vsel %vm368, %v367, %v365
        %371 = vst [vmem:[#allocation2 + $0x70] sm:$0xff] %v369
        %372 = vst [vmem:[#allocation2 + $0x78] sm:$0xff] %v370
        %373 = vrot.lane.b32.xlu0 %v283, 111
        %v374 = vpop.permute.xlu0 %373
        %375 = vrot.lane.b32.xlu0 %v284, 111
        %v376 = vpop.permute.xlu0 %375
        %vm377 = vcmp.lt.s32.totalorder %v311, 111
        %v378 = vsel %vm377, %v374, %v376
        %v379 = vsel %vm377, %v376, %v374
        %380 = vst [vmem:[#allocation2 + $0x80] sm:$0xff] %v378
        %381 = vst [vmem:[#allocation2 + $0x88] sm:$0xff] %v379
        %v382 = vld [vmem:[#allocation2] sm:$0xff]
        %v383 = vld [vmem:[#allocation2 + $0x8] sm:$0xff]
        %v384 = vld [vmem:[#allocation2 + $0x10] sm:$0xff]
        %v385 = vld [vmem:[#allocation2 + $0x18] sm:$0xff]
        %v386 = vld [vmem:[#allocation2 + $0x20] sm:$0xff]
        %v387 = vld [vmem:[#allocation2 + $0x28] sm:$0xff]
        %v388 = vld [vmem:[#allocation2 + $0x30] sm:$0xff]
        %v389 = vld [vmem:[#allocation2 + $0x38] sm:$0xff]
        %v390 = vld [vmem:[#allocation2 + $0x40] sm:$0xff]
        %v391 = vld [vmem:[#allocation2 + $0x48] sm:$0xff]
        %v392 = vld [vmem:[#allocation2 + $0x50] sm:$0xff]
        %v393 = vld [vmem:[#allocation2 + $0x58] sm:$0xff]
        %v394 = vld [vmem:[#allocation2 + $0x60] sm:$0xff]
        %v395 = vld [vmem:[#allocation2 + $0x68] sm:$0xff]
        %v396 = vld [vmem:[#allocation2 + $0x70] sm:$0xff]
        %v397 = vld [vmem:[#allocation2 + $0x78] sm:$0xff]
        %v398 = vld [vmem:[#allocation2 + $0x80] sm:$0xff]
        %v399 = vld [vmem:[#allocation2 + $0x88] sm:$0xff]
        %v400 = vmul.f32 %v382, %v285
        %v401 = vmul.f32 %v383, %v286
        %v402 = vmul.f32 %v384, %v287
        %v403 = vmul.f32 %v385, %v288
        %v404 = vmul.f32 %v386, %v289
        %v405 = vmul.f32 %v387, %v290
        %v406 = vmul.f32 %v388, %v291
        %v407 = vmul.f32 %v389, %v292
        %v408 = vmul.f32 %v390, %v293
        %v409 = vmul.f32 %v391, %v294
        %v410 = vmul.f32 %v392, %v295
        %v411 = vmul.f32 %v393, %v296
        %v412 = vmul.f32 %v394, %v297
        %v413 = vmul.f32 %v395, %v298
        %v414 = vmul.f32 %v396, %v299
        %v415 = vmul.f32 %v397, %v300
        %v416 = vmul.f32 %v398, %v301
        %v417 = vmul.f32 %v399, %v302
        %419 = vset.pattern.permute.xlu0 0
        %420 = vperm.xlu0 %419, %v305
        %v421 = vpop.permute.xlu0 %420
        %vm423 = vcmask 588800
        %v425 = vsel %vm423, %v303, 0
        %427 = vmatprep.subr.mxu0 %v401
        %428 = vmatpush1.msra.mxu0 %v400
        %429 = vmatprep.subr.mxu0 %v403
        %430 = vmatpush1.msra.mxu0 %v402
        %431 = vmatprep.subr.mxu0 %v405
        %432 = vmatpush1.msra.mxu0 %v404
        %433 = vmatprep.subr.mxu0 %v407
        %434 = vmatpush1.msra.mxu0 %v406
        %435 = vmatprep.subr.mxu0 %v409
        %436 = vmatpush1.msra.mxu0 %v408
        %437 = vmatprep.subr.mxu0 %v411
        %438 = vmatpush1.msra.mxu0 %v410
        %439 = vmatprep.subr.mxu0 %v413
        %440 = vmatpush1.msra.mxu0 %v412
        %441 = vmatprep.subr.mxu0 %v415
        %442 = vmatpush1.msra.mxu0 %v414
        %443 = vmatprep.subr.mxu0 %v417
        %444 = vmatpush1.msra.mxu0 %v416
        %445 = vmatprep.subr.mxu0 0.0
        %446 = vmatpush1.msra.mxu0 0.0
        %447 = vmatprep.subr.mxu0 0.0
        %448 = vmatpush1.msra.mxu0 0.0
        %449 = vmatprep.subr.mxu0 0.0
        %450 = vmatpush1.msra.mxu0 0.0
        %451 = vmatprep.subr.mxu0 0.0
        %452 = vmatpush1.msra.mxu0 0.0
        %453 = vmatprep.subr.mxu0 0.0
        %454 = vmatpush1.msra.mxu0 0.0
        %455 = vmatprep.subr.mxu0 0.0
        %456 = vmatpush1.msra.mxu0 0.0
        %457 = vmatprep.subr.mxu0 0.0
        %458 = vmatpush1.msra.mxu0 0.0
        %459 = vmatprep.subr.mxu0 0.0
        %460 = vmatpush1.msra.mxu0 0.0
        %461 = vmatprep.subr.mxu0 0.0
        %462 = vmatpush1.msra.mxu0 0.0
        %463 = vmatprep.subr.mxu0 0.0
        %464 = vmatpush1.msra.mxu0 0.0
        %465 = vmatprep.subr.mxu0 0.0
        %466 = vmatpush1.msra.mxu0 0.0
        %467 = vmatprep.subr.mxu0 0.0
        %468 = vmatpush1.msra.mxu0 0.0
        %469 = vmatprep.subr.mxu0 0.0
        %470 = vmatpush1.msra.mxu0 0.0
        %471 = vmatprep.subr.mxu0 0.0
        %472 = vmatpush1.msra.mxu0 0.0
        %473 = vmatprep.subr.mxu0 0.0
        %474 = vmatpush1.msra.mxu0 0.0
        %475 = vmatprep.subr.mxu0 0.0
        %476 = vmatpush1.msra.mxu0 0.0
        %477 = vmatprep.subr.mxu0 0.0
        %478 = vmatpush1.msra.mxu0 0.0
        %479 = vmatprep.subr.mxu0 0.0
        %480 = vmatpush1.msra.mxu0 0.0
        %481 = vmatprep.subr.mxu0 0.0
        %482 = vmatpush1.msra.mxu0 0.0
        %483 = vmatprep.subr.mxu0 0.0
        %484 = vmatpush1.msra.mxu0 0.0
        %485 = vmatprep.subr.mxu0 0.0
        %486 = vmatpush1.msra.mxu0 0.0
        %487 = vmatprep.subr.mxu0 0.0
        %488 = vmatpush1.msra.mxu0 0.0
        %489 = vmatprep.subr.mxu0 0.0
        %490 = vmatpush1.msra.mxu0 0.0
        %491 = vmatprep.mubr.f32.mxu0 0.0
        %492 = vmatmul.mubr.f32.gmra.mrb[0].mxu0 %v425
        %v493 = vpop.f32.mrb[0].mxu0
        %v494 = vadd.f32 %v421, %v493
        %v495 = vpop.f32.mrb[0].mxu0
        %v496 = vadd.f32 %v421, %v495
        %497 = vdwg.mxu0
        %v498 = vmax.f32 %v494, 0.0
        %v499 = vmax.f32 %v496, 0.0
        %v500 = vld [vmem:[%s5] sm:$0xff]
        %501 = vrot.lane.b32.xlu0 %v498, 17
        %v502 = vpop.permute.xlu0 %501
        %503 = vrot.lane.b32.xlu0 %v499, 17
        %v504 = vpop.permute.xlu0 %503
        %v505 = vsel %vm312, %v502, %v504
        %v506 = vsel %vm312, %v504, %v502
        %507 = vst [vmem:[#allocation2] sm:$0xff] %v506
        %508 = vst [vmem:[#allocation2 + $0x8] sm:$0xff] %v505
        %509 = vrot.lane.b32.xlu0 %v498, 16
        %v510 = vpop.permute.xlu0 %509
        %511 = vrot.lane.b32.xlu0 %v499, 16
        %v512 = vpop.permute.xlu0 %511
        %v513 = vsel %vm321, %v510, %v512
        %v514 = vsel %vm321, %v512, %v510
        %515 = vst [vmem:[#allocation2 + $0x10] sm:$0xff] %v514
        %516 = vst [vmem:[#allocation2 + $0x18] sm:$0xff] %v513
        %517 = vrot.lane.b32.xlu0 %v498, 15
        %v518 = vpop.permute.xlu0 %517
        %519 = vrot.lane.b32.xlu0 %v499, 15
        %v520 = vpop.permute.xlu0 %519
        %v521 = vsel %vm330, %v518, %v520
        %v522 = vsel %vm330, %v520, %v518
        %523 = vst [vmem:[#allocation2 + $0x20] sm:$0xff] %v522
        %524 = vst [vmem:[#allocation2 + $0x28] sm:$0xff] %v521
        %525 = vrot.lane.b32.xlu0 %v498, 1
        %v526 = vpop.permute.xlu0 %525
        %527 = vrot.lane.b32.xlu0 %v499, 1
        %v528 = vpop.permute.xlu0 %527
        %v529 = vsel %vm339, %v526, %v528
        %v530 = vsel %vm339, %v528, %v526
        %531 = vst [vmem:[#allocation2 + $0x30] sm:$0xff] %v530
        %532 = vst [vmem:[#allocation2 + $0x38] sm:$0xff] %v529
        %533 = vst [vmem:[#allocation2 + $0x40] sm:$0xff] %v498
        %534 = vst [vmem:[#allocation2 + $0x48] sm:$0xff] %v499
        %535 = vrot.lane.b32.xlu0 %v498, 127
        %v536 = vpop.permute.xlu0 %535
        %537 = vrot.lane.b32.xlu0 %v499, 127
        %v538 = vpop.permute.xlu0 %537
        %v539 = vsel %vm350, %v536, %v538
        %v540 = vsel %vm350, %v538, %v536
        %541 = vst [vmem:[#allocation2 + $0x50] sm:$0xff] %v539
        %542 = vst [vmem:[#allocation2 + $0x58] sm:$0xff] %v540
        %543 = vrot.lane.b32.xlu0 %v498, 113
        %v544 = vpop.permute.xlu0 %543
        %545 = vrot.lane.b32.xlu0 %v499, 113
        %v546 = vpop.permute.xlu0 %545
        %v547 = vsel %vm359, %v544, %v546
        %v548 = vsel %vm359, %v546, %v544
        %549 = vst [vmem:[#allocation2 + $0x60] sm:$0xff] %v547
        %550 = vst [vmem:[#allocation2 + $0x68] sm:$0xff] %v548
        %551 = vrot.lane.b32.xlu0 %v498, 112
        %v552 = vpop.permute.xlu0 %551
        %553 = vrot.lane.b32.xlu0 %v499, 112
        %v554 = vpop.permute.xlu0 %553
        %v555 = vsel %vm368, %v552, %v554
        %v556 = vsel %vm368, %v554, %v552
        %557 = vst [vmem:[#allocation2 + $0x70] sm:$0xff] %v555
        %558 = vst [vmem:[#allocation2 + $0x78] sm:$0xff] %v556
        %559 = vrot.lane.b32.xlu0 %v498, 111
        %v560 = vpop.permute.xlu0 %559
        %561 = vrot.lane.b32.xlu0 %v499, 111
        %v562 = vpop.permute.xlu0 %561
        %v563 = vsel %vm377, %v560, %v562
        %v564 = vsel %vm377, %v562, %v560
        %565 = vst [vmem:[#allocation2 + $0x80] sm:$0xff] %v563
        %566 = vst [vmem:[#allocation2 + $0x88] sm:$0xff] %v564
        %v567 = vld [vmem:[#allocation2] sm:$0xff]
        %v568 = vld [vmem:[#allocation2 + $0x8] sm:$0xff]
        %v569 = vld [vmem:[#allocation2 + $0x10] sm:$0xff]
        %v570 = vld [vmem:[#allocation2 + $0x18] sm:$0xff]
        %v571 = vld [vmem:[#allocation2 + $0x20] sm:$0xff]
        %v572 = vld [vmem:[#allocation2 + $0x28] sm:$0xff]
        %v573 = vld [vmem:[#allocation2 + $0x30] sm:$0xff]
        %v574 = vld [vmem:[#allocation2 + $0x38] sm:$0xff]
        %v575 = vld [vmem:[#allocation2 + $0x40] sm:$0xff]
        %v576 = vld [vmem:[#allocation2 + $0x48] sm:$0xff]
        %v577 = vld [vmem:[#allocation2 + $0x50] sm:$0xff]
        %v578 = vld [vmem:[#allocation2 + $0x58] sm:$0xff]
        %v579 = vld [vmem:[#allocation2 + $0x60] sm:$0xff]
        %v580 = vld [vmem:[#allocation2 + $0x68] sm:$0xff]
        %v581 = vld [vmem:[#allocation2 + $0x70] sm:$0xff]
        %v582 = vld [vmem:[#allocation2 + $0x78] sm:$0xff]
        %v583 = vld [vmem:[#allocation2 + $0x80] sm:$0xff]
        %v584 = vld [vmem:[#allocation2 + $0x88] sm:$0xff]
        %v585 = vmul.f32 %v567, %v285
        %v586 = vmul.f32 %v568, %v286
        %v587 = vmul.f32 %v569, %v287
        %v588 = vmul.f32 %v570, %v288
        %v589 = vmul.f32 %v571, %v289
        %v590 = vmul.f32 %v572, %v290
        %v591 = vmul.f32 %v573, %v291
        %v592 = vmul.f32 %v574, %v292
        %v593 = vmul.f32 %v575, %v293
        %v594 = vmul.f32 %v576, %v294
        %v595 = vmul.f32 %v577, %v295
        %v596 = vmul.f32 %v578, %v296
        %v597 = vmul.f32 %v579, %v297
        %v598 = vmul.f32 %v580, %v298
        %v599 = vmul.f32 %v581, %v299
        %v600 = vmul.f32 %v582, %v300
        %v601 = vmul.f32 %v583, %v301
        %v602 = vmul.f32 %v584, %v302
        %604 = vset.pattern.permute.xlu0 0
        %605 = vperm.xlu0 %604, %v500
        %v606 = vpop.permute.xlu0 %605
        %v609 = vsel %vm423, %v304, 0
        %611 = vmatprep.subr.mxu0 %v586
        %612 = vmatpush1.msra.mxu0 %v585
        %613 = vmatprep.subr.mxu0 %v588
        %614 = vmatpush1.msra.mxu0 %v587
        %615 = vmatprep.subr.mxu0 %v590
        %616 = vmatpush1.msra.mxu0 %v589
        %617 = vmatprep.subr.mxu0 %v592
        %618 = vmatpush1.msra.mxu0 %v591
        %619 = vmatprep.subr.mxu0 %v594
        %620 = vmatpush1.msra.mxu0 %v593
        %621 = vmatprep.subr.mxu0 %v596
        %622 = vmatpush1.msra.mxu0 %v595
        %623 = vmatprep.subr.mxu0 %v598
        %624 = vmatpush1.msra.mxu0 %v597
        %625 = vmatprep.subr.mxu0 %v600
        %626 = vmatpush1.msra.mxu0 %v599
        %627 = vmatprep.subr.mxu0 %v602
        %628 = vmatpush1.msra.mxu0 %v601
        %629 = vmatprep.subr.mxu0 0.0
        %630 = vmatpush1.msra.mxu0 0.0
        %631 = vmatprep.subr.mxu0 0.0
        %632 = vmatpush1.msra.mxu0 0.0
        %633 = vmatprep.subr.mxu0 0.0
        %634 = vmatpush1.msra.mxu0 0.0
        %635 = vmatprep.subr.mxu0 0.0
        %636 = vmatpush1.msra.mxu0 0.0
        %637 = vmatprep.subr.mxu0 0.0
        %638 = vmatpush1.msra.mxu0 0.0
        %639 = vmatprep.subr.mxu0 0.0
        %640 = vmatpush1.msra.mxu0 0.0
        %641 = vmatprep.subr.mxu0 0.0
        %642 = vmatpush1.msra.mxu0 0.0
        %643 = vmatprep.subr.mxu0 0.0
        %644 = vmatpush1.msra.mxu0 0.0
        %645 = vmatprep.subr.mxu0 0.0
        %646 = vmatpush1.msra.mxu0 0.0
        %647 = vmatprep.subr.mxu0 0.0
        %648 = vmatpush1.msra.mxu0 0.0
        %649 = vmatprep.subr.mxu0 0.0
        %650 = vmatpush1.msra.mxu0 0.0
        %651 = vmatprep.subr.mxu0 0.0
        %652 = vmatpush1.msra.mxu0 0.0
        %653 = vmatprep.subr.mxu0 0.0
        %654 = vmatpush1.msra.mxu0 0.0
        %655 = vmatprep.subr.mxu0 0.0
        %656 = vmatpush1.msra.mxu0 0.0
        %657 = vmatprep.subr.mxu0 0.0
        %658 = vmatpush1.msra.mxu0 0.0
        %659 = vmatprep.subr.mxu0 0.0
        %660 = vmatpush1.msra.mxu0 0.0
        %661 = vmatprep.subr.mxu0 0.0
        %662 = vmatpush1.msra.mxu0 0.0
        %663 = vmatprep.subr.mxu0 0.0
        %664 = vmatpush1.msra.mxu0 0.0
        %665 = vmatprep.subr.mxu0 0.0
        %666 = vmatpush1.msra.mxu0 0.0
        %667 = vmatprep.subr.mxu0 0.0
        %668 = vmatpush1.msra.mxu0 0.0
        %669 = vmatprep.subr.mxu0 0.0
        %670 = vmatpush1.msra.mxu0 0.0
        %671 = vmatprep.subr.mxu0 0.0
        %672 = vmatpush1.msra.mxu0 0.0
        %673 = vmatprep.subr.mxu0 0.0
        %674 = vmatpush1.msra.mxu0 0.0
        %675 = vmatprep.mubr.f32.mxu0 0.0
        %676 = vmatmul.mubr.f32.gmra.mrb[0].mxu0 %v609
        %v677 = vpop.f32.mrb[0].mxu0
        %v678 = vadd.f32 %v606, %v677
        %v679 = vpop.f32.mrb[0].mxu0
        %v680 = vadd.f32 %v606, %v679
        %681 = vdwg.mxu0
        %v682 = vadd.f32 %v283, %v678
        %v683 = vadd.f32 %v284, %v680
        %v684 = vmax.f32 %v682, 0.0
        %v685 = vmax.f32 %v683, 0.0
        %686 = vst [vmem:[%s282] sm:$0xff] %v684
        %687 = vst [vmem:[%s282 + $0x8] sm:$0xff] %v685
        %s688 = sand.u32 %s163, 1
        %s689 = scalar_lea.sflag [#allocation5], %s688
        %s690 = sand.u32 %s163, 1
        %s691 = smul.addr %s690, 16
        %s692 = scalar_lea.vmem [#allocation8], %s691
        // Predicated region
        $region53: #{tpu_custom_call.1} parent=43 // pred_check
          %p693 = pneg %p173
        $region54: #{tpu_custom_call.1} parent=43 // pred_check_branch
          %695 = sbr.rel (%p693) target = $region56
        $region55: #{tpu_custom_call.1} parent=43 // pred_region
          %s697 = ssub.s32 256, 256
          %698 = vsyncadd %s689, %s697
          %s699 = smul.addr %s24, 2
          %s700 = smul.addr %s699, 128
          %s701 = scalar_lea.hbm %s6, %s700
          %s703 = sshll.u32 %s692, 4
          %s704 = int_to_ptr.vmem [resolvable:$true] %s703
          %706 = dma.vmem_to_hbm [thread:$0]  %s704, 256, %s701, %s689
        $region56: #{tpu_custom_call.1} parent=43 // pred_fallthru
          _
      $region44: #{tpu_custom_call.1} parent=5 // pred_fallthru
        _
      %p707 = scmp.le.s32.totalorder 2, %s19
      // Predicated region
      $region57: #{tpu_custom_call.1} parent=5 // pred_check
        %p708 = pneg %p707
      $region58: #{tpu_custom_call.1} parent=5 // pred_check_branch
        %710 = sbr.rel (%p708) target = $region60
      $region59: #{tpu_custom_call.1} parent=5 // pred_region
        %s711 = ssub.s32 %s19, 2
        // Predicated region
        $region61: #{tpu_custom_call.1} parent=59 // pred_check
          %p712 = pneg %p179
        $region62: #{tpu_custom_call.1} parent=59 // pred_check_branch
          %714 = sbr.rel (%p712) target = $region64
        $region63: #{tpu_custom_call.1} parent=59 // pred_region
          %s715 = sand.u32 %s164, 1
          %s716 = scalar_lea.sflag [#allocation5], %s715
          %s717 = sand.u32 %s164, 1
          %s718 = smul.addr %s717, 16
          %s719 = scalar_lea.vmem [#allocation8], %s718
          %720 = dma.done %s716, 256
        $region64: #{tpu_custom_call.1} parent=59 // pred_fallthru
          _
      $region60: #{tpu_custom_call.1} parent=5 // pred_fallthru
        _
    $region6: #{tpu_custom_call.1} parent=1 // loop_footer
      %s23 = sadd.s32 1, %s19
    $region7: #{tpu_custom_call.1} parent=1 // loop_footer_branch
      %18 = sbr.rel target = $region3
    $region8: #{tpu_custom_call.1} parent=1 // loop_exit
      _
    %721 = vsyncpa [#allocation4], 1
    %s722 = scalar_lea.sflag [#allocation4], 1
    %723 = vsyncpa %s722, 1
    %724 = vsyncpa [#allocation7], 1
    %725 = vsyncpa [#allocation5], 1
    %s726 = scalar_lea.sflag [#allocation5], 1
    %727 = vsyncpa %s726, 1

</llo_original>
